<compile_context>
chip_gen: v7x
topology: tpu7x:2x2x1
jax: 0.10.0
libtpu: 0.0.40
codegen_flags: <defaults>
</compile_context>

<pallas_src>
import functools

import jax
import jax.numpy as jnp
from jax.experimental import pallas as pl
from jax.experimental.pallas import tpu as pltpu

_MIB = 1024 * 1024


# ----------------------------------------------------------------------------
# Path A: whole sequence per block (the common case).
# ----------------------------------------------------------------------------
def _attention_kernel(x_ref, w_ref, b_ref, ctx_ref, attw_ref):
    # x_ref:    (Bt, T, D)  lstm_output tile
    # w_ref:    (1, D)      linear weight (lane-dense)
    # b_ref:    (1,)        linear bias in SMEM (scalar path)
    # ctx_ref:  (Bt, D)     context output (lane-dense)
    # attw_ref: (Bt, T)     attention weights output (lane-dense slab)
    x = x_ref[...].astype(jnp.float32)                      # (Bt, T, D)
    w = w_ref[...].astype(jnp.float32)                      # (1, D)

    # Scores in the layout the D (lane) reduction naturally produces:
    # (Bt, T, 1) with T on sublanes -> no relayout before/after the softmax.
    s = jnp.sum(x * w, axis=-1, keepdims=True) + b_ref[0]   # (Bt, T, 1)

    # Numerically stable softmax over T (sublane axis).
    m = jnp.max(s, axis=1, keepdims=True)                   # (Bt, 1, 1)
    e = jnp.exp(s - m)                                      # (Bt, T, 1)
    denom = jnp.sum(e, axis=1, keepdims=True)               # (Bt, 1, 1)
    # approx=False keeps 1e-5 parity with the reference softmax.
    p = e * pl.reciprocal(denom, approx=False)              # (Bt, T, 1)

    # context[b, d] = sum_t p[b, t] * x[b, t, d]  (lane broadcast + sublane
    # reduce; the f32 product temporary is accounted for in the VMEM budget).
    ctx = jnp.sum(x * p, axis=1)                             # (Bt, D)
    ctx_ref[...] = ctx.astype(ctx_ref.dtype)

    # Single sublane->lane relayout, right at the lane-dense store.
    attw_ref[...] = p[:, :, 0].astype(attw_ref.dtype)        # (Bt, T)


# ----------------------------------------------------------------------------
# Path B: T-tiled, flash-style online softmax (large T*D).
# ----------------------------------------------------------------------------
def _attention_tiled_kernel(x_ref, w_ref, b_ref, ctx_ref, scores_ref,
                            m_sc, l_sc, acc_sc, *, t_tile, seq_len, needs_mask):
    # x_ref:      (Bt, Tt, D)  lstm_output block for this T tile
    # ctx_ref:    (Bt, D)      context output (resident across the T axis)
    # scores_ref: (Bt, Tt)     raw scores block (normalized in the wrapper)
    # m_sc/l_sc:  (Bt, 1)      running max / running denominator
    # acc_sc:     (Bt, D)      running (unnormalized) context accumulator
    t = pl.program_id(1)
    n_t = pl.num_programs(1)

    @pl.when(t == 0)
    def _():
        m_sc[...] = jnp.full_like(m_sc, -jnp.inf)
        l_sc[...] = jnp.zeros_like(l_sc)
        acc_sc[...] = jnp.zeros_like(acc_sc)

    x = x_ref[...].astype(jnp.float32)                       # (Bt, Tt, D)
    w = w_ref[...].astype(jnp.float32)                       # (1, D)

    if needs_mask:
        # Ragged final T block: zero the out-of-range rows (their contents are
        # unspecified) and exclude them from the softmax.
        pos = t * t_tile + jax.lax.broadcasted_iota(
            jnp.int32, (x.shape[0], x.shape[1], 1), 1)
        valid = pos < seq_len
        x = jnp.where(valid, x, 0.0)

    s = jnp.sum(x * w, axis=-1, keepdims=True) + b_ref[0]    # (Bt, Tt, 1)
    if needs_mask:
        s = jnp.where(valid, s, -jnp.inf)

    # Online softmax update (sublane layout, no relayouts).
    m_prev = m_sc[...]                                       # (Bt, 1)
    m_new = jnp.maximum(m_prev, jnp.max(s, axis=1))          # (Bt, 1)
    alpha = jnp.exp(m_prev - m_new)                          # (Bt, 1)
    p = jnp.exp(s - m_new[:, :, None])                       # (Bt, Tt, 1)

    l_sc[...] = alpha * l_sc[...] + jnp.sum(p, axis=1)           # (Bt, 1)
    acc_sc[...] = alpha * acc_sc[...] + jnp.sum(x * p, axis=1)   # (Bt, D)
    m_sc[...] = m_new

    # Raw scores for this block (lane-dense); the wrapper normalizes them into
    # attention weights once the global max/denominator are known, which avoids
    # a second pass over the (B, T, D) input.
    scores_ref[...] = s[:, :, 0]

    @pl.when(t == n_t - 1)
    def _():
        inv_l = pl.reciprocal(l_sc[...], approx=False)        # (Bt, 1)
        ctx_ref[...] = (acc_sc[...] * inv_l).astype(ctx_ref.dtype)


# ----------------------------------------------------------------------------
# Tiling / VMEM sizing helpers.
# ----------------------------------------------------------------------------
def _vmem_capacity_bytes():
    try:
        return int(pltpu.get_tpu_info().vmem_capacity_bytes)
    except Exception:
        return 64 * _MIB   # conservative fallback (v7x per-TensorCore VMEM)


def _block_cost_bytes(bt, tt, D, itemsize):
    x_blk = bt * tt * D * itemsize            # input block (x2: double-buffered)
    temp = bt * tt * D * 4                    # in-kernel f32 product temporary
    outs = 2 * bt * (D + max(tt, 128)) * 4    # double-buffered outputs
    scratch = bt * (D + 16) * 4               # online-softmax scratch (Path B)
    return 2 * x_blk + temp + outs + scratch


def _choose_tiles(B, T, D, itemsize, budget_bytes):
    """Pick (b_tile, t_tile). t_tile == T means the untiled (Path A) kernel."""
    # Valid batch tiles: multiples of 8 dividing B (sublane constraint of the
    # 2-D outputs) or the whole batch.  Prefer >= 2 batch steps so the
    # "parallel" grid axis can shard across v7x's two TensorCores.
    proper = [bt for bt in range(8, B // 2 + 1, 8) if B % bt == 0]
    cands = sorted(proper, reverse=True) if proper else [B]

    for bt in cands:                           # Path A: whole sequence per block
        if _block_cost_bytes(bt, T, D, itemsize) <= budget_bytes:
            return bt, T

    # Path B: tile the time axis.  t_tile must be a multiple of 128 (lane
    # constraint of the raw-scores output block).
    bt = cands[-1]
    if T <= 128:
        return bt, T
    tt = max(128, (T // 128) * 128)
    while tt > 128 and _block_cost_bytes(bt, tt, D, itemsize) > budget_bytes:
        tt -= 128
    return bt, tt


# ----------------------------------------------------------------------------
# Public wrapper.
# ----------------------------------------------------------------------------
def attention_forward(lstm_output, weight, bias, *, b_tile=None, t_tile=None,
                      vmem_budget_bytes=None):
    """Pallas forward pass of the Attention module.

    Args:
      lstm_output: (B, T, D) with D = hidden_size * 2
      weight:      (1, D)  nn.Linear weight (out_features=1)
      bias:        (1,)    nn.Linear bias

    Returns:
      context: (B, D), attention_weights: (B, T, 1)
    """
    B, T, D = lstm_output.shape
    itemsize = jnp.dtype(lstm_output.dtype).itemsize
    out_dtype = lstm_output.dtype
    w2d = weight.reshape(1, D).astype(jnp.float32)
    b1d = bias.reshape(1).astype(jnp.float32)

    # Generation-aware VMEM sizing: ~3/8 of capacity as block budget, up to
    # ~3/4 as the scoped-VMEM limit (48/96 MiB on v5e/v6e, 24/48 MiB on v7x).
    vmem_cap = _vmem_capacity_bytes()
    if vmem_budget_bytes is None:
        vmem_budget_bytes = (3 * vmem_cap) // 8
    auto_bt, auto_tt = _choose_tiles(B, T, D, itemsize, vmem_budget_bytes)
    if b_tile is None:
        b_tile = auto_bt
    if t_tile is None:
        t_tile = auto_tt
    assert B % b_tile == 0 and (b_tile % 8 == 0 or b_tile == B)
    use_tiled = t_tile < T
    if use_tiled:
        assert t_tile % 128 == 0, "t_tile must be a multiple of 128 when tiling T"

    blk_cost = _block_cost_bytes(b_tile, min(t_tile, T), D, itemsize)
    vmem_limit = int(min(max(2 * blk_cost, 16 * _MIB), (3 * vmem_cap) // 4))
    n_b = B // b_tile

    if not use_tiled:
        grid_spec = pltpu.PrefetchScalarGridSpec(
            num_scalar_prefetch=0,
            grid=(n_b,),
            in_specs=[
                pl.BlockSpec((b_tile, T, D), lambda i: (i, 0, 0)),   # lstm_output
                pl.BlockSpec((1, D), lambda i: (0, 0)),              # weight
                pl.BlockSpec(memory_space=pltpu.MemorySpace.SMEM),   # bias
            ],
            out_specs=[
                pl.BlockSpec((b_tile, D), lambda i: (i, 0)),         # context
                pl.BlockSpec((b_tile, T), lambda i: (i, 0)),         # attn weights
            ],
        )
        context, attw = pl.pallas_call(
            _attention_kernel,
            out_shape=(
                jax.ShapeDtypeStruct((B, D), out_dtype),
                jax.ShapeDtypeStruct((B, T), out_dtype),
            ),
            grid_spec=grid_spec,
            compiler_params=pltpu.CompilerParams(
                dimension_semantics=("parallel",),
                vmem_limit_bytes=vmem_limit,
            ),
        )(lstm_output, w2d, b1d)
        return context, attw.reshape(B, T, 1)

    # ---- T-tiled path (online softmax over the T grid axis) ----
    n_t = (T + t_tile - 1) // t_tile
    needs_mask = (n_t * t_tile != T)
    kernel = functools.partial(_attention_tiled_kernel, t_tile=t_tile,
                               seq_len=T, needs_mask=needs_mask)
    grid_spec = pltpu.PrefetchScalarGridSpec(
        num_scalar_prefetch=0,
        grid=(n_b, n_t),
        in_specs=[
            pl.BlockSpec((b_tile, t_tile, D), lambda i, t: (i, t, 0)),
            pl.BlockSpec((1, D), lambda i, t: (0, 0)),
            pl.BlockSpec(memory_space=pltpu.MemorySpace.SMEM),
        ],
        out_specs=[
            pl.BlockSpec((b_tile, D), lambda i, t: (i, 0)),        # ctx (resident over t)
            pl.BlockSpec((b_tile, t_tile), lambda i, t: (i, t)),   # raw scores
        ],
        scratch_shapes=[
            pltpu.VMEM((b_tile, 1), jnp.float32),    # running max
            pltpu.VMEM((b_tile, 1), jnp.float32),    # running denominator
            pltpu.VMEM((b_tile, D), jnp.float32),    # context accumulator
        ],
    )
    context, scores = pl.pallas_call(
        kernel,
        out_shape=(
            jax.ShapeDtypeStruct((B, D), out_dtype),
            jax.ShapeDtypeStruct((B, T), jnp.float32),
        ),
        grid_spec=grid_spec,
        compiler_params=pltpu.CompilerParams(
            dimension_semantics=("parallel", "arbitrary"),
            vmem_limit_bytes=vmem_limit,
        ),
    )(lstm_output, w2d, b1d)
    # O(B*T) epilogue: per-step weights need the global max/denominator, which
    # are only known after the last T block; normalizing the tiny (B, T) score
    # slab here avoids a second pass over the (B, T, D) input.
    attw = jax.nn.softmax(scores, axis=-1).astype(out_dtype)
    return context, attw.reshape(B, T, 1)


def _reference(lstm_output, weight, bias):
    # Pure-JAX reference mirroring the PyTorch forward exactly.
    scores = jnp.einsum("btd,od->bto", lstm_output, weight) + bias  # (B, T, 1)
    attn = jax.nn.softmax(scores, axis=1)
    context = jnp.sum(lstm_output * attn, axis=1)
    return context, attn


if __name__ == "__main__":
    # --- Case 1: module-sized input (Path A: whole sequence per block) ---
    B, T, hidden_size = 2, 8, 16
    D = hidden_size * 2  # 32
    k_x, k_w, k_b = jax.random.split(jax.random.PRNGKey(0), 3)
    lstm_output = jax.random.normal(k_x, (B, T, D), dtype=jnp.float32)
    bound = 1.0 / jnp.sqrt(jnp.float32(D))
    weight = jax.random.uniform(k_w, (1, D), minval=-bound, maxval=bound,
                                dtype=jnp.float32)
    bias = jax.random.uniform(k_b, (1,), minval=-bound, maxval=bound,
                              dtype=jnp.float32)

    ctx, attw = attention_forward(lstm_output, weight, bias)
    ctx = jax.block_until_ready(ctx)
    attw = jax.block_until_ready(attw)
    ref_ctx, ref_attw = _reference(lstm_output, weight, bias)
    assert ctx.shape == (B, D) and attw.shape == (B, T, 1)
    assert jnp.allclose(ctx, ref_ctx, atol=1e-5, rtol=1e-5)
    assert jnp.allclose(attw, ref_attw, atol=1e-5, rtol=1e-5)

    # --- Case 2: force the T-tiled online-softmax path (incl. ragged tail) ---
    B2, T2, D2 = 8, 320, 128
    k_x2, k_w2, k_b2 = jax.random.split(jax.random.PRNGKey(0), 3)
    x2 = jax.random.normal(k_x2, (B2, T2, D2), dtype=jnp.float32)
    bound2 = 1.0 / jnp.sqrt(jnp.float32(D2))
    w2 = jax.random.uniform(k_w2, (1, D2), minval=-bound2, maxval=bound2,
                            dtype=jnp.float32)
    b2 = jax.random.uniform(k_b2, (1,), minval=-bound2, maxval=bound2,
                            dtype=jnp.float32)

    ctx2, attw2 = attention_forward(x2, w2, b2, t_tile=128)
    ctx2 = jax.block_until_ready(ctx2)
    attw2 = jax.block_until_ready(attw2)
    ref_ctx2, ref_attw2 = _reference(x2, w2, b2)
    assert jnp.allclose(ctx2, ref_ctx2, atol=1e-5, rtol=1e-5)
    assert jnp.allclose(attw2, ref_attw2, atol=1e-5, rtol=1e-5)

    print("KERNEL_OK")
</pallas_src>

<mosaic_0001>
module attributes {stable_mosaic.version = 11 : i64} {
  func.func @_attention_kernel(%arg0: i32, %arg1: memref<2x8x32xf32, #tpu.memory_space<vmem>>, %arg2: memref<1x32xf32, #tpu.memory_space<vmem>>, %arg3: memref<1xf32, #tpu.memory_space<smem>>, %arg4: memref<2x32xf32, #tpu.memory_space<vmem>>, %arg5: memref<2x8xf32, #tpu.memory_space<vmem>>) attributes {dimension_semantics = [#tpu.dimension_semantics<parallel>], iteration_bounds = array<i64: 1>, scalar_prefetch = 0 : i64, scratch_operands = 0 : i64, tpu.core_type = #tpu.core_type<tc>, window_params = [{transform_indices = @transform_0, window_bounds = array<i64: 2, 8, 32>}, {pipeline_mode = #tpu.pipeline_mode<synchronous>, transform_indices = @transform_1, window_bounds = array<i64: 1, 32>}, {transform_indices = @transform_2, window_bounds = array<i64: 1>}, {transform_indices = @transform_3, window_bounds = array<i64: 2, 32>}, {transform_indices = @transform_4, window_bounds = array<i64: 2, 8>}]} {
    %c0 = arith.constant 0 : index
    %c0_0 = arith.constant 0 : index
    %c0_1 = arith.constant 0 : index
    %0 = vector.load %arg1[%c0, %c0_0, %c0_1] : memref<2x8x32xf32, #tpu.memory_space<vmem>>, vector<2x8x32xf32>
    %c0_2 = arith.constant 0 : index
    %c0_3 = arith.constant 0 : index
    %1 = vector.load %arg2[%c0_2, %c0_3] : memref<1x32xf32, #tpu.memory_space<vmem>>, vector<1x32xf32>
    %2 = vector.shape_cast %1 : vector<1x32xf32> to vector<1x1x32xf32>
    %3 = vector.broadcast %2 : vector<1x1x32xf32> to vector<2x8x32xf32>
    %4 = arith.mulf %0, %3 : vector<2x8x32xf32>
    %cst = arith.constant dense<0.000000e+00> : vector<2x8xf32>
    %5 = vector.multi_reduction <add>, %4, %cst [2] : vector<2x8x32xf32> to vector<2x8xf32>
    %6 = vector.shape_cast %5 : vector<2x8xf32> to vector<2x8x1xf32>
    %c0_4 = arith.constant 0 : index
    %7 = memref.load %arg3[%c0_4] : memref<1xf32, #tpu.memory_space<smem>>
    %8 = vector.broadcast %7 : f32 to vector<2x8x1xf32>
    %9 = arith.addf %6, %8 : vector<2x8x1xf32>
    %cst_5 = arith.constant dense<0xFF800000> : vector<2x1xf32>
    %10 = vector.multi_reduction <maximumf>, %9, %cst_5 [1] : vector<2x8x1xf32> to vector<2x1xf32>
    %11 = vector.shape_cast %10 : vector<2x1xf32> to vector<2x1x1xf32>
    %12 = vector.broadcast %11 : vector<2x1x1xf32> to vector<2x8x1xf32>
    %13 = arith.subf %9, %12 : vector<2x8x1xf32>
    %14 = math.exp %13 : vector<2x8x1xf32>
    %cst_6 = arith.constant dense<0.000000e+00> : vector<2x1xf32>
    %15 = vector.multi_reduction <add>, %14, %cst_6 [1] : vector<2x8x1xf32> to vector<2x1xf32>
    %16 = vector.shape_cast %15 : vector<2x1xf32> to vector<2x1x1xf32>
    %17 = tpu.reciprocal %16 : vector<2x1x1xf32> -> vector<2x1x1xf32>
    %18 = vector.broadcast %17 : vector<2x1x1xf32> to vector<2x8x1xf32>
    %19 = arith.mulf %14, %18 : vector<2x8x1xf32>
    %20 = vector.broadcast %19 : vector<2x8x1xf32> to vector<2x8x32xf32>
    %21 = arith.mulf %0, %20 : vector<2x8x32xf32>
    %cst_7 = arith.constant dense<0.000000e+00> : vector<2x32xf32>
    %22 = vector.multi_reduction <add>, %21, %cst_7 [1] : vector<2x8x32xf32> to vector<2x32xf32>
    %c0_8 = arith.constant 0 : index
    %c0_9 = arith.constant 0 : index
    %23 = vector.load %arg4[%c0_8, %c0_9] : memref<2x32xf32, #tpu.memory_space<vmem>>, vector<2x32xf32>
    tpu.vector_store %arg4[%c0_8, %c0_9], %22 {strides = array<i32>} : memref<2x32xf32, #tpu.memory_space<vmem>>, vector<2x32xf32>,
    %24 = vector.shape_cast %19 : vector<2x8x1xf32> to vector<2x8xf32>
    %c0_10 = arith.constant 0 : index
    %c0_11 = arith.constant 0 : index
    %25 = vector.load %arg5[%c0_10, %c0_11] : memref<2x8xf32, #tpu.memory_space<vmem>>, vector<2x8xf32>
    tpu.vector_store %arg5[%c0_10, %c0_11], %24 {strides = array<i32>} : memref<2x8xf32, #tpu.memory_space<vmem>>, vector<2x8xf32>,
    return
  }
  func.func @transform_0(%arg0: i32) -> (i32, i32, i32) {
    %c0_i32 = arith.constant 0 : i32
    %c0_i32_0 = arith.constant 0 : i32
    %c0_i32_1 = arith.constant 0 : i32
    return %arg0, %c0_i32, %c0_i32_0 : i32, i32, i32
  }
  func.func @transform_1(%arg0: i32) -> (i32, i32) {
    %c0_i32 = arith.constant 0 : i32
    %c0_i32_0 = arith.constant 0 : i32
    %c0_i32_1 = arith.constant 0 : i32
    return %c0_i32, %c0_i32_0 : i32, i32
  }
  func.func @transform_2(%arg0: i32) -> i32 {
    %c0_i32 = arith.constant 0 : i32
    %c0_i32_0 = arith.constant 0 : i32
    return %c0_i32 : i32
  }
  func.func @transform_3(%arg0: i32) -> (i32, i32) {
    %c0_i32 = arith.constant 0 : i32
    %c0_i32_0 = arith.constant 0 : i32
    return %arg0, %c0_i32 : i32, i32
  }
  func.func @transform_4(%arg0: i32) -> (i32, i32) {
    %c0_i32 = arith.constant 0 : i32
    %c0_i32_0 = arith.constant 0 : i32
    return %arg0, %c0_i32 : i32, i32
  }
}

</mosaic_0001>

<llo_original>
// kernel: tpu_custom_call.1
$region0: #{tpu_custom_call.1}
  #allocation0 [shape = 'u32[]', space=smem, size = 0x4, offset = 0x4, fixed_abs, tag = 'smem constant byte address 0x4 - core index']
  #allocation1 [shape = 'u32[144,128]{1,0:T(1,128)}', space=vmem, size = 0x12000, scoped, tag = 'internal scratch']
  #allocation2 [shape = 'f32[1]{0:T(128)S(6)}', space=smem, size = 0x200, scoped, tag = 'scoped memory for tpu_custom_call.1']
  %s0 = inlined_call_operand.hbm [shape: f32[2,8,32], index: 0, kind: input, shape index: {}]
  %s1 = inlined_call_operand.vmem [shape: f32[1,32], index: 1, kind: input, shape index: {}]
  %s2 = inlined_call_operand.<no memory space> [shape: f32[1], index: 2, kind: input, shape index: {}]
  %s3 = inlined_call_operand.hbm [shape: f32[2,32], index: 3, kind: output, shape index: {0}]
  %s4 = inlined_call_operand.hbm [shape: f32[2,8], index: 4, kind: output, shape index: {1}]
  %5 = xla_tuple %s3, %s4
  %s6 = sld [smem:[#allocation0]]
  $region34: #{tpu_custom_call.1} parent=0
    _
  %s8 = ssub.s32 1, %s6
  %s9 = scalar_select 0, %s8, %s6
  %10 = sst [smem:[#allocation2]] %s2
  $region1: #{tpu_custom_call.1} parent=0
    #allocation3 [shape = 'u8[8192]{0}', space=vmem, size = 0x2000, scoped, tag = 'input window, operand 0, single buffered']
    #allocation4 [shape = 's32[1]{0}', space=sflag, size = 0x4, scoped, tag = 'scoped memory for tpu_custom_call.1']
    #allocation5 [shape = 's32[1]{0}', space=sflag, size = 0x4, scoped, tag = 'scoped memory for tpu_custom_call.1']
    #allocation6 [shape = 'u8[1024]{0}', space=vmem, size = 0x400, scoped, tag = 'output window, operand 0, single buffered']
    #allocation7 [shape = 'u8[1024]{0}', space=vmem, size = 0x400, scoped, tag = 'output window, operand 1, single buffered']
    #allocation8 [shape = 's32[1]{0}', space=sflag, size = 0x4, scoped, tag = 'scoped memory for tpu_custom_call.1']
    %11 = vsyncpa [#allocation4], 0
    %12 = vsyncpa [#allocation5], 0
    %13 = vsyncpa [#allocation8], 0
    // Predicated region
    $region2: #{tpu_custom_call.1} parent=1 // pred_check
      _
    $region3: #{tpu_custom_call.1} parent=1 // pred_check_branch
      %15 = sbr.rel (0) target = $region5
    $region4: #{tpu_custom_call.1} parent=1 // pred_region
      %s17 = ssub.s32 256, 256
      %18 = vsyncadd [#allocation4], %s17
      %s19 = sshll.u32 [#allocation3], 4
      %s20 = int_to_ptr.vmem [resolvable:$true] %s19
      %25 = dma.hbm_to_vmem [thread:$0]  %s0, 256, %s20, [#allocation4], 128, 128, 8
    $region5: #{tpu_custom_call.1} parent=1 // pred_fallthru
      _
    // Predicated region
    $region6: #{tpu_custom_call.1} parent=1 // pred_check
      _
    $region7: #{tpu_custom_call.1} parent=1 // pred_check_branch
      %27 = sbr.rel (0) target = $region9
    $region8: #{tpu_custom_call.1} parent=1 // pred_region
      _
    $region9: #{tpu_custom_call.1} parent=1 // pred_fallthru
      _
    // Predicated region
    $region10: #{tpu_custom_call.1} parent=1 // pred_check
      _
    $region11: #{tpu_custom_call.1} parent=1 // pred_check_branch
      %29 = sbr.rel (0) target = $region13
    $region12: #{tpu_custom_call.1} parent=1 // pred_region
      _
    $region13: #{tpu_custom_call.1} parent=1 // pred_fallthru
      _
    // Predicated region
    $region14: #{tpu_custom_call.1} parent=1 // pred_check
      _
    $region15: #{tpu_custom_call.1} parent=1 // pred_check_branch
      %31 = sbr.rel (0) target = $region17
    $region16: #{tpu_custom_call.1} parent=1 // pred_region
      %32 = dma.done [#allocation4], 256
    $region17: #{tpu_custom_call.1} parent=1 // pred_fallthru
      _
    %v33 = vld [vmem:[#allocation3] sm:$0xff]
    %v34 = vld [vmem:[#allocation3 + $0x8] sm:$0xff]
    %v35 = vld [vmem:[%s1] sm:$0x1]
    %v37 = vlaneseq
    %v38 = vshrl.u32 %v37, 7
    %v39 = vsub.s32 0, %v38
    %v40 = vrot.slane %v35, %v39
    %v42 = vmul.f32 %v33, %v40
    %v43 = vmul.f32 %v34, %v40
    %vm44 = vcmask 261120
    %v45 = vsel %vm44, %v42, 0.0
    %46 = vadd.xlane.f32.xlu0 %v45
    %v47 = vpop.xlane.xlu0 %46
    %v48 = vsel %vm44, %v43, 0.0
    %49 = vadd.xlane.f32.xlu0 %v48
    %v50 = vpop.xlane.xlu0 %49
    %s51 = sld [smem:[#allocation2]]
    %v52 = vstv %s51
    %v53 = vadd.f32 %v47, %v52
    %v54 = vadd.f32 %v50, %v52
    %v55 = vrot.slane %v53, 4
    %v56 = vmax.f32 %v53, %v55
    %v57 = vrot.slane %v56, 2
    %v58 = vmax.f32 %v56, %v57
    %v59 = vrot.slane %v58, 1
    %v60 = vmax.f32 %v58, %v59
    %v61 = vrot.slane %v54, 4
    %v62 = vmax.f32 %v54, %v61
    %v63 = vrot.slane %v62, 2
    %v64 = vmax.f32 %v62, %v63
    %v65 = vrot.slane %v64, 1
    %v66 = vmax.f32 %v64, %v65
    %v67 = vsub.f32 %v53, %v60
    %v68 = vsub.f32 %v54, %v66
    %v69 = vmul.f32 %v67, 1.442695
    %v70 = vpow.pop %v69
    %v71 = vmul.f32 %v68, 1.442695
    %v72 = vpow.pop %v71
    %v73 = vrot.slane %v70, 4
    %v74 = vadd.f32 %v70, %v73
    %v75 = vrot.slane %v74, 2
    %v76 = vadd.f32 %v74, %v75
    %v77 = vrot.slane %v76, 1
    %v78 = vadd.f32 %v76, %v77
    %v79 = vrot.slane %v72, 4
    %v80 = vadd.f32 %v72, %v79
    %v81 = vrot.slane %v80, 2
    %v82 = vadd.f32 %v80, %v81
    %v83 = vrot.slane %v82, 1
    %v84 = vadd.f32 %v82, %v83
    %v85 = vrcp.pop %v78
    %v86 = vrcp.pop %v84
    %v87 = vmul.f32 %v70, %v85
    %v88 = vmul.f32 %v72, %v86
    %v89 = vmul.f32 %v33, %v87
    %v90 = vmul.f32 %v34, %v88
    %v91 = vsel %vm44, %v89, 0.0
    %v92 = vrot.slane %v91, 4
    %v93 = vadd.f32 %v91, %v92
    %v94 = vrot.slane %v93, 2
    %v95 = vadd.f32 %v93, %v94
    %v96 = vrot.slane %v95, 1
    %v97 = vadd.f32 %v95, %v96
    %v98 = vsel %vm44, %v90, 0.0
    %v99 = vrot.slane %v98, 4
    %v100 = vadd.f32 %v98, %v99
    %v101 = vrot.slane %v100, 2
    %v102 = vadd.f32 %v100, %v101
    %v103 = vrot.slane %v102, 1
    %v104 = vadd.f32 %v102, %v103
    %vm107 = vcmask 1041409
    %v108 = vsel %vm107, %v104, %v97
    %vm110 = vcmask 254976
    %111 = vst.msk [vmem:[#allocation6] sm:$0x3] %vm110, %v108
    %v114 = vlaneseq
    %v115 = vand.u32 %v114, 127
    %v116 = vlaneseq
    %v117 = vshrl.u32 %v116, 7
    %v118 = vsub.s32 %v115, %v117
    %v119 = vrot.slane %v87, %v118
    %v120 = vlaneseq
    %v121 = vshrl.u32 %v120, 7
    %v122 = vsub.s32 %v115, %v121
    %v123 = vrot.slane %v88, %v122
    %v124 = vsel %vm107, %v123, %v119
    %vm126 = vcmask 58368
    %127 = vst.msk [vmem:[#allocation7] sm:$0x3] %vm126, %v124
    // Predicated region
    $region18: #{tpu_custom_call.1} parent=1 // pred_check
      _
    $region19: #{tpu_custom_call.1} parent=1 // pred_check_branch
      %129 = sbr.rel (0) target = $region21
    $region20: #{tpu_custom_call.1} parent=1 // pred_region
      %s131 = ssub.s32 32, 32
      %132 = vsyncadd [#allocation5], %s131
      %s134 = sshll.u32 [#allocation6], 4
      %s135 = int_to_ptr.vmem [resolvable:$true] %s134
      %137 = dma.vmem_to_hbm [thread:$0]  %s135, 32, %s3, [#allocation5]
    $region21: #{tpu_custom_call.1} parent=1 // pred_fallthru
      _
    // Predicated region
    $region22: #{tpu_custom_call.1} parent=1 // pred_check
      _
    $region23: #{tpu_custom_call.1} parent=1 // pred_check_branch
      %139 = sbr.rel (0) target = $region25
    $region24: #{tpu_custom_call.1} parent=1 // pred_region
      %s141 = ssub.s32 32, 32
      %142 = vsyncadd [#allocation8], %s141
      %s144 = sshll.u32 [#allocation7], 4
      %s145 = int_to_ptr.vmem [resolvable:$true] %s144
      %147 = dma.vmem_to_hbm [thread:$0]  %s145, 32, %s4, [#allocation8]
    $region25: #{tpu_custom_call.1} parent=1 // pred_fallthru
      _
    // Predicated region
    $region26: #{tpu_custom_call.1} parent=1 // pred_check
      _
    $region27: #{tpu_custom_call.1} parent=1 // pred_check_branch
      %149 = sbr.rel (0) target = $region29
    $region28: #{tpu_custom_call.1} parent=1 // pred_region
      %150 = dma.done [#allocation5], 32
    $region29: #{tpu_custom_call.1} parent=1 // pred_fallthru
      _
    // Predicated region
    $region30: #{tpu_custom_call.1} parent=1 // pred_check
      _
    $region31: #{tpu_custom_call.1} parent=1 // pred_check_branch
      %152 = sbr.rel (0) target = $region33
    $region32: #{tpu_custom_call.1} parent=1 // pred_region
      %153 = dma.done [#allocation8], 32
    $region33: #{tpu_custom_call.1} parent=1 // pred_fallthru
      _
    %154 = vsyncpa [#allocation4], 1
    %155 = vsyncpa [#allocation5], 1
    %156 = vsyncpa [#allocation8], 1

</llo_original>
